<compile_context>
chip_gen: v5e
topology: v5e:2x2
jax: 0.10.0
libtpu: 0.0.40
codegen_flags: <defaults>
</compile_context>

<pallas_src>
import functools

import jax
import jax.numpy as jnp
from jax import lax
from jax.experimental import pallas as pl
from jax.experimental.pallas import tpu as pltpu

EPS = 1e-5  # nn.LayerNorm default


# ---------------------------------------------------------------------------
# Hardware-derived VMEM budget.
# ---------------------------------------------------------------------------
_VMEM_CAP = None


def _vmem_cap():
    global _VMEM_CAP
    if _VMEM_CAP is None:
        cap = None
        try:
            info = pltpu.get_tpu_info()
            cap = getattr(info, "vmem_capacity_bytes", None)
        except Exception:
            cap = None
        _VMEM_CAP = int(cap) if cap else 128 * 1024 * 1024  # v5e/v6e default
    return _VMEM_CAP


def _vmem_limit():
    # ~78% of physical VMEM: ~100 MiB on v5e/v6e (128 MiB phys), ~50 MiB on
    # v7x (64 MiB phys) — leaves headroom for compiler scratch / semaphores.
    return int(_vmem_cap() * 0.78)


# ---------------------------------------------------------------------------
# Shared LayerNorm math (f32 rows inside the kernels).
# ---------------------------------------------------------------------------
def _ln_rows(x_f32, g_f32, b_f32, inv_dim):
    # Two INDEPENDENT reductions (sum, sum of squares) so the XLU work is not
    # a serial dependency chain ahead of the MXU:  var = E[x^2] - mean^2.
    s1 = jnp.sum(x_f32, axis=-1, keepdims=True)
    s2 = jnp.sum(x_f32 * x_f32, axis=-1, keepdims=True)
    mean = s1 * inv_dim
    var = jnp.maximum(s2 * inv_dim - mean * mean, 0.0)  # biased var (PyTorch)
    inv = lax.rsqrt(var + EPS)
    return (x_f32 - mean) * inv * g_f32 + b_f32


# ---------------------------------------------------------------------------
# Kernel 1: standalone LayerNorm (used when `fn` is an arbitrary callable).
# ---------------------------------------------------------------------------
def _layernorm_kernel(x_ref, g_ref, b_ref, o_ref, *, inv_dim):
    y = _ln_rows(x_ref[...].astype(jnp.float32),
                 g_ref[...].astype(jnp.float32),
                 b_ref[...].astype(jnp.float32),
                 inv_dim)
    o_ref[...] = y.astype(o_ref.dtype)


# ---------------------------------------------------------------------------
# Kernel 2: fused LayerNorm + Linear (the ViT pre-norm -> projection hot path).
# ---------------------------------------------------------------------------
def _fused_ln_linear_kernel(x_ref, g_ref, b_ref, w_ref, bias_ref, o_ref, *,
                            inv_dim, chunk, mxu_dtype):
    g = g_ref[...].astype(jnp.float32)
    b = b_ref[...].astype(jnp.float32)
    w = w_ref[...]
    if mxu_dtype is not None and w.dtype != mxu_dtype:
        w = w.astype(mxu_dtype)
    bias = bias_ref[...].astype(jnp.float32)

    tile = x_ref.shape[0]
    n_chunks = tile // chunk
    # Independent row chunks: the LN (VPU/XLU/EUP) work of chunk j+1 can be
    # scheduled under the MXU consuming chunk j — no data dependence between
    # chunks, so the LLO scheduler is free to co-issue them.
    for j in range(n_chunks):          # small static trip count, fully unrolled
        r0 = j * chunk
        xj = x_ref[pl.ds(r0, chunk), :].astype(jnp.float32)
        yj = _ln_rows(xj, g, b, inv_dim)
        # Feed the MXU in the weight dtype (deliberate precision drop when the
        # weights / mxu_dtype are bf16), accumulate in f32.
        acc = jnp.dot(yj.astype(w.dtype), w, preferred_element_type=jnp.float32)
        o_ref[pl.ds(r0, chunk), :] = (acc + bias).astype(o_ref.dtype)


# ---------------------------------------------------------------------------
# Tiling / spec helpers.
# ---------------------------------------------------------------------------
def _row_tile(rows, dtype, max_tile_rows):
    min_sub = 16 if jnp.dtype(dtype) == jnp.bfloat16 else 8
    rounded = ((rows + min_sub - 1) // min_sub) * min_sub
    return max(min(max_tile_rows, rounded), min_sub)


def _spec(shape, index_map, single_buffer):
    """BlockSpec; single-buffer constant operands when supported."""
    if single_buffer:
        try:
            return pl.BlockSpec(shape, index_map, pipeline_mode=pl.Buffered(1))
        except Exception:
            pass
    return pl.BlockSpec(shape, index_map)


# ---------------------------------------------------------------------------
# Wrapper: standalone LayerNorm over (rows, dim).
# ---------------------------------------------------------------------------
def layernorm_pallas(x2, gamma, beta, *, max_tile_rows=None):
    rows, dim = x2.shape
    gamma = gamma.reshape(1, dim)
    beta = beta.reshape(1, dim)
    if max_tile_rows is None:
        max_tile_rows = 1024 if _vmem_cap() >= 96 * 1024 * 1024 else 512
    tile = _row_tile(rows, x2.dtype, max_tile_rows)
    grid = (pl.cdiv(rows, tile),)  # partial edge block masked by Pallas
    kern = functools.partial(_layernorm_kernel, inv_dim=1.0 / dim)

    def run(single_buffer):
        return pl.pallas_call(
            kern,
            out_shape=jax.ShapeDtypeStruct((rows, dim), x2.dtype),
            grid_spec=pltpu.PrefetchScalarGridSpec(
                num_scalar_prefetch=0,
                grid=grid,
                in_specs=[
                    pl.BlockSpec((tile, dim), lambda i: (i, 0)),
                    _spec((1, dim), lambda i: (0, 0), single_buffer),
                    _spec((1, dim), lambda i: (0, 0), single_buffer),
                ],
                out_specs=pl.BlockSpec((tile, dim), lambda i: (i, 0)),
            ),
            compiler_params=pltpu.CompilerParams(
                dimension_semantics=("parallel",),
                vmem_limit_bytes=_vmem_limit(),
            ),
        )(x2, gamma, beta)

    try:
        return run(True)
    except Exception:
        return run(False)   # fallback if Buffered(1) unsupported


# ---------------------------------------------------------------------------
# Wrapper: fused LayerNorm + Linear over (rows, d_in) -> (rows, d_out).
# ---------------------------------------------------------------------------
def layernorm_linear_pallas(x2, gamma, beta, w, bias, *,
                            mxu_dtype=None, max_tile_rows=None):
    rows, d_in = x2.shape
    d_out = w.shape[1]
    gamma = gamma.reshape(1, d_in)
    beta = beta.reshape(1, d_in)
    bias = bias.reshape(1, d_out)

    cap = _vmem_cap()
    big_vmem = cap >= 96 * 1024 * 1024           # v5e/v6e: 128 MiB; v7x: 64 MiB
    if max_tile_rows is None:
        max_tile_rows = 512 if big_vmem else 256
    tile = _row_tile(rows, x2.dtype, max_tile_rows)

    act_b = jnp.dtype(x2.dtype).itemsize
    w_b = jnp.dtype(w.dtype).itemsize
    budget = int(cap * 0.55)

    def fits(tn):
        return (d_in * tn * w_b                  # weight (single-buffered)
                + 2 * tile * d_in * act_b        # double-buffered input tile
                + 2 * tile * tn * act_b          # double-buffered output tile
                + tile * (d_in + tn) * 4         # f32 LN rows + accumulator
                ) <= budget

    # Keep the whole weight resident when possible; otherwise tile d_out
    # (multiple of 256) — the 4x MLP projection case on v7x's 64 MiB VMEM.
    tn = d_out
    if not fits(tn):
        for cand in (4096, 2048, 1024, 512, 256):
            if cand < d_out and fits(cand):
                tn = cand
                break
        else:
            tn = min(d_out, 256)
    n_col = pl.cdiv(d_out, tn)

    # LN/MXU overlap: split the row tile into independent chunks.
    if tile % 512 == 0:
        chunk = 256
    elif tile % 256 == 0:
        chunk = 128
    else:
        chunk = tile

    kern = functools.partial(_fused_ln_linear_kernel,
                             inv_dim=1.0 / d_in, chunk=chunk, mxu_dtype=mxu_dtype)

    cost = pl.CostEstimate(
        flops=2 * rows * d_in * d_out,
        transcendentals=rows,                      # one rsqrt per row
        bytes_accessed=(rows * d_in + rows * d_out) * act_b
        + (d_in * d_out + d_out) * w_b + 2 * d_in * 4,
    )

    def run(single_buffer):
        # Grid order: column tile (j) slowest so the weight block stays
        # resident across all row tiles; both axes are independent.
        return pl.pallas_call(
            kern,
            out_shape=jax.ShapeDtypeStruct((rows, d_out), x2.dtype),
            grid_spec=pltpu.PrefetchScalarGridSpec(
                num_scalar_prefetch=0,
                grid=(n_col, pl.cdiv(rows, tile)),
                in_specs=[
                    pl.BlockSpec((tile, d_in), lambda j, i: (i, 0)),
                    _spec((1, d_in), lambda j, i: (0, 0), single_buffer),
                    _spec((1, d_in), lambda j, i: (0, 0), single_buffer),
                    _spec((d_in, tn), lambda j, i: (0, j), single_buffer),
                    _spec((1, tn), lambda j, i: (0, j), single_buffer),
                ],
                out_specs=pl.BlockSpec((tile, tn), lambda j, i: (i, j)),
            ),
            compiler_params=pltpu.CompilerParams(
                dimension_semantics=("parallel", "parallel"),
                vmem_limit_bytes=_vmem_limit(),
            ),
            cost_estimate=cost,
        )(x2, gamma, beta, w, bias)

    try:
        return run(True)
    except Exception:
        return run(False)   # fallback if Buffered(1) unsupported


# ---------------------------------------------------------------------------
# LayerNormalize module equivalent:  forward(x) = fn(LayerNorm(x))
# ---------------------------------------------------------------------------
def layer_normalize_forward(x, gamma, beta, fn, **kwargs):
    """Generic path (arbitrary fn): x is (batch, seq, dim); fn runs in JAX."""
    B, S, D = x.shape
    y = layernorm_pallas(x.reshape(B * S, D), gamma, beta).reshape(B, S, D)
    return fn(y, **kwargs)


def layer_normalize_linear_forward(x, gamma, beta, w, bias, *, mxu_dtype=None):
    """Fused fast path for the common ViT case where fn is Linear(dim, d_out).

    Pass mxu_dtype=jnp.bfloat16 on v6e/v7x to run the MXU in bf16 when the
    weights arrive as f32 (documented precision drop; f32 accumulation kept).
    """
    B, S, D = x.shape
    out = layernorm_linear_pallas(x.reshape(B * S, D), gamma, beta, w, bias,
                                  mxu_dtype=mxu_dtype)
    return out.reshape(B, S, -1)


if __name__ == "__main__":
    key = jax.random.PRNGKey(0)
    B, S, D = 2, 8, 32

    kx, kw, kb = jax.random.split(key, 3)
    x = jax.random.normal(kx, (B, S, D), dtype=jnp.float32)

    # nn.LayerNorm(dim) default init: weight=1, bias=0 (PyTorch stores (dim,)).
    gamma = jnp.ones((D,), dtype=jnp.float32)
    beta = jnp.zeros((D,), dtype=jnp.float32)

    # Deterministic params for the example `fn` (Linear(dim, dim)).
    W = jax.random.normal(kw, (D, D), dtype=jnp.float32) / jnp.sqrt(D)
    bvec = jax.random.normal(kb, (D,), dtype=jnp.float32) * 0.01

    # Fused LN + Linear (single pallas_call, f32 MXU operands).
    out_fused = layer_normalize_linear_forward(x, gamma, beta, W, bvec)
    jax.block_until_ready(out_fused)

    # Generic path (standalone LN kernel + arbitrary fn) for module parity.
    out_generic = layer_normalize_forward(
        x, gamma, beta, lambda y: jnp.einsum("bsd,de->bse", y, W) + bvec)
    jax.block_until_ready(out_generic)

    # bf16-MXU fast path (v6e/v7x recommendation) — deliberate precision drop.
    out_bf16 = layer_normalize_linear_forward(x, gamma, beta, W, bvec,
                                              mxu_dtype=jnp.bfloat16)
    jax.block_until_ready(out_bf16)

    # Correctness check vs plain-JAX reference.
    mean = jnp.mean(x, axis=-1, keepdims=True)
    var = jnp.mean((x - mean) ** 2, axis=-1, keepdims=True)
    ln_ref = (x - mean) * lax.rsqrt(var + EPS) * gamma + beta
    ref = jnp.einsum("bsd,de->bse", ln_ref, W) + bvec

    assert jnp.allclose(out_fused, ref, atol=1e-4, rtol=1e-4), "fused kernel mismatch"
    assert jnp.allclose(out_generic, ref, atol=1e-4, rtol=1e-4), "LN kernel mismatch"
    assert jnp.allclose(out_bf16, ref, atol=5e-2, rtol=5e-2), "bf16 fused mismatch"

    print("KERNEL_OK")
</pallas_src>

<mosaic_0001>
module attributes {stable_mosaic.version = 11 : i64} {
  func.func @_fused_ln_linear_kernel(%arg0: i32, %arg1: i32, %arg2: memref<16x32xf32, #tpu.memory_space<vmem>>, %arg3: memref<1x32xf32, #tpu.memory_space<vmem>>, %arg4: memref<1x32xf32, #tpu.memory_space<vmem>>, %arg5: memref<32x32xf32, #tpu.memory_space<vmem>>, %arg6: memref<1x32xf32, #tpu.memory_space<vmem>>, %arg7: memref<16x32xf32, #tpu.memory_space<vmem>>) attributes {dimension_semantics = [#tpu.dimension_semantics<parallel>, #tpu.dimension_semantics<parallel>], iteration_bounds = array<i64: 1, 1>, scalar_prefetch = 0 : i64, scratch_operands = 0 : i64, tpu.core_type = #tpu.core_type<tc>, window_params = [{transform_indices = @transform_0, window_bounds = array<i64: 16, 32>}, {pipeline_mode = #tpu.pipeline_mode<synchronous>, transform_indices = @transform_1, window_bounds = array<i64: 1, 32>}, {pipeline_mode = #tpu.pipeline_mode<synchronous>, transform_indices = @transform_2, window_bounds = array<i64: 1, 32>}, {pipeline_mode = #tpu.pipeline_mode<synchronous>, transform_indices = @transform_3, window_bounds = array<i64: 32, 32>}, {pipeline_mode = #tpu.pipeline_mode<synchronous>, transform_indices = @transform_4, window_bounds = array<i64: 1, 32>}, {transform_indices = @transform_5, window_bounds = array<i64: 16, 32>}]} {
    %c0 = arith.constant 0 : index
    %c0_0 = arith.constant 0 : index
    %0 = vector.load %arg3[%c0, %c0_0] : memref<1x32xf32, #tpu.memory_space<vmem>>, vector<1x32xf32>
    %c0_1 = arith.constant 0 : index
    %c0_2 = arith.constant 0 : index
    %1 = vector.load %arg4[%c0_1, %c0_2] : memref<1x32xf32, #tpu.memory_space<vmem>>, vector<1x32xf32>
    %c0_3 = arith.constant 0 : index
    %c0_4 = arith.constant 0 : index
    %2 = vector.load %arg5[%c0_3, %c0_4] : memref<32x32xf32, #tpu.memory_space<vmem>>, vector<32x32xf32>
    %c0_5 = arith.constant 0 : index
    %c0_6 = arith.constant 0 : index
    %3 = vector.load %arg6[%c0_5, %c0_6] : memref<1x32xf32, #tpu.memory_space<vmem>>, vector<1x32xf32>
    %c0_7 = arith.constant 0 : index
    %c0_8 = arith.constant 0 : index
    %4 = vector.load %arg2[%c0_7, %c0_8] : memref<16x32xf32, #tpu.memory_space<vmem>>, vector<16x32xf32>
    %cst = arith.constant dense<0.000000e+00> : vector<16xf32>
    %5 = vector.multi_reduction <add>, %4, %cst [1] : vector<16x32xf32> to vector<16xf32>
    %6 = vector.shape_cast %5 : vector<16xf32> to vector<16x1xf32>
    %7 = arith.mulf %4, %4 : vector<16x32xf32>
    %cst_9 = arith.constant dense<0.000000e+00> : vector<16xf32>
    %8 = vector.multi_reduction <add>, %7, %cst_9 [1] : vector<16x32xf32> to vector<16xf32>
    %9 = vector.shape_cast %8 : vector<16xf32> to vector<16x1xf32>
    %cst_10 = arith.constant 3.125000e-02 : f32
    %10 = vector.broadcast %cst_10 : f32 to vector<16x1xf32>
    %11 = arith.mulf %6, %10 : vector<16x1xf32>
    %cst_11 = arith.constant 3.125000e-02 : f32
    %12 = vector.broadcast %cst_11 : f32 to vector<16x1xf32>
    %13 = arith.mulf %9, %12 : vector<16x1xf32>
    %14 = arith.mulf %11, %11 : vector<16x1xf32>
    %15 = arith.subf %13, %14 : vector<16x1xf32>
    %cst_12 = arith.constant 0.000000e+00 : f32
    %16 = vector.broadcast %cst_12 : f32 to vector<16x1xf32>
    %17 = arith.maximumf %15, %16 : vector<16x1xf32>
    %cst_13 = arith.constant 9.99999974E-6 : f32
    %18 = vector.broadcast %cst_13 : f32 to vector<16x1xf32>
    %19 = arith.addf %17, %18 : vector<16x1xf32>
    %20 = math.rsqrt %19 : vector<16x1xf32>
    %21 = vector.broadcast %11 : vector<16x1xf32> to vector<16x32xf32>
    %22 = arith.subf %4, %21 : vector<16x32xf32>
    %23 = vector.broadcast %20 : vector<16x1xf32> to vector<16x32xf32>
    %24 = arith.mulf %22, %23 : vector<16x32xf32>
    %25 = vector.broadcast %0 : vector<1x32xf32> to vector<16x32xf32>
    %26 = arith.mulf %24, %25 : vector<16x32xf32>
    %27 = vector.broadcast %1 : vector<1x32xf32> to vector<16x32xf32>
    %28 = arith.addf %26, %27 : vector<16x32xf32>
    %cst_14 = arith.constant dense<0.000000e+00> : vector<16x32xf32>
    %29 = tpu.matmul %28, %2, %cst_14 {dimension_numbers = #tpu.dot_dimension_numbers<[1], [0], [0], [1], [0, 0, 1, 1], [], []>} : vector<16x32xf32>, vector<32x32xf32>, vector<16x32xf32> -> vector<16x32xf32>
    %30 = vector.broadcast %3 : vector<1x32xf32> to vector<16x32xf32>
    %31 = arith.addf %29, %30 : vector<16x32xf32>
    %c0_15 = arith.constant 0 : index
    %c0_16 = arith.constant 0 : index
    %32 = vector.load %arg7[%c0_15, %c0_16] : memref<16x32xf32, #tpu.memory_space<vmem>>, vector<16x32xf32>
    tpu.vector_store %arg7[%c0_15, %c0_16], %31 {strides = array<i32>} : memref<16x32xf32, #tpu.memory_space<vmem>>, vector<16x32xf32>,
    return
  }
  func.func @transform_0(%arg0: i32, %arg1: i32) -> (i32, i32) {
    %c0_i32 = arith.constant 0 : i32
    %c0_i32_0 = arith.constant 0 : i32
    return %arg1, %c0_i32 : i32, i32
  }
  func.func @transform_1(%arg0: i32, %arg1: i32) -> (i32, i32) {
    %c0_i32 = arith.constant 0 : i32
    %c0_i32_0 = arith.constant 0 : i32
    %c0_i32_1 = arith.constant 0 : i32
    return %c0_i32, %c0_i32_0 : i32, i32
  }
  func.func @transform_2(%arg0: i32, %arg1: i32) -> (i32, i32) {
    %c0_i32 = arith.constant 0 : i32
    %c0_i32_0 = arith.constant 0 : i32
    %c0_i32_1 = arith.constant 0 : i32
    return %c0_i32, %c0_i32_0 : i32, i32
  }
  func.func @transform_3(%arg0: i32, %arg1: i32) -> (i32, i32) {
    %c0_i32 = arith.constant 0 : i32
    %c0_i32_0 = arith.constant 0 : i32
    return %c0_i32, %arg0 : i32, i32
  }
  func.func @transform_4(%arg0: i32, %arg1: i32) -> (i32, i32) {
    %c0_i32 = arith.constant 0 : i32
    %c0_i32_0 = arith.constant 0 : i32
    return %c0_i32, %arg0 : i32, i32
  }
  func.func @transform_5(%arg0: i32, %arg1: i32) -> (i32, i32) {
    %c0_i32 = arith.constant 0 : i32
    return %arg1, %arg0 : i32, i32
  }
}

module attributes {stable_mosaic.version = 11 : i64} {
  func.func @_fused_ln_linear_kernel(%arg0: i32, %arg1: i32, %arg2: memref<16x32xf32, #tpu.memory_space<vmem>>, %arg3: memref<1x32xf32, #tpu.memory_space<vmem>>, %arg4: memref<1x32xf32, #tpu.memory_space<vmem>>, %arg5: memref<32x32xf32, #tpu.memory_space<vmem>>, %arg6: memref<1x32xf32, #tpu.memory_space<vmem>>, %arg7: memref<16x32xf32, #tpu.memory_space<vmem>>) attributes {dimension_semantics = [#tpu.dimension_semantics<parallel>, #tpu.dimension_semantics<parallel>], iteration_bounds = array<i64: 1, 1>, scalar_prefetch = 0 : i64, scratch_operands = 0 : i64, tpu.core_type = #tpu.core_type<tc>, window_params = [{transform_indices = @transform_0, window_bounds = array<i64: 16, 32>}, {pipeline_mode = #tpu.pipeline_mode<synchronous>, transform_indices = @transform_1, window_bounds = array<i64: 1, 32>}, {pipeline_mode = #tpu.pipeline_mode<synchronous>, transform_indices = @transform_2, window_bounds = array<i64: 1, 32>}, {transform_indices = @transform_3, window_bounds = array<i64: 32, 32>}, {transform_indices = @transform_4, window_bounds = array<i64: 1, 32>}, {transform_indices = @transform_5, window_bounds = array<i64: 16, 32>}]} {
    %c0 = arith.constant 0 : index
    %c0_0 = arith.constant 0 : index
    %0 = vector.load %arg3[%c0, %c0_0] : memref<1x32xf32, #tpu.memory_space<vmem>>, vector<1x32xf32>
    %c0_1 = arith.constant 0 : index
    %c0_2 = arith.constant 0 : index
    %1 = vector.load %arg4[%c0_1, %c0_2] : memref<1x32xf32, #tpu.memory_space<vmem>>, vector<1x32xf32>
    %c0_3 = arith.constant 0 : index
    %c0_4 = arith.constant 0 : index
    %2 = vector.load %arg5[%c0_3, %c0_4] : memref<32x32xf32, #tpu.memory_space<vmem>>, vector<32x32xf32>
    %c0_5 = arith.constant 0 : index
    %c0_6 = arith.constant 0 : index
    %3 = vector.load %arg6[%c0_5, %c0_6] : memref<1x32xf32, #tpu.memory_space<vmem>>, vector<1x32xf32>
    %c0_7 = arith.constant 0 : index
    %c0_8 = arith.constant 0 : index
    %4 = vector.load %arg2[%c0_7, %c0_8] : memref<16x32xf32, #tpu.memory_space<vmem>>, vector<16x32xf32>
    %cst = arith.constant dense<0.000000e+00> : vector<16xf32>
    %5 = vector.multi_reduction <add>, %4, %cst [1] : vector<16x32xf32> to vector<16xf32>
    %6 = vector.shape_cast %5 : vector<16xf32> to vector<16x1xf32>
    %7 = arith.mulf %4, %4 : vector<16x32xf32>
    %cst_9 = arith.constant dense<0.000000e+00> : vector<16xf32>
    %8 = vector.multi_reduction <add>, %7, %cst_9 [1] : vector<16x32xf32> to vector<16xf32>
    %9 = vector.shape_cast %8 : vector<16xf32> to vector<16x1xf32>
    %cst_10 = arith.constant 3.125000e-02 : f32
    %10 = vector.broadcast %cst_10 : f32 to vector<16x1xf32>
    %11 = arith.mulf %6, %10 : vector<16x1xf32>
    %cst_11 = arith.constant 3.125000e-02 : f32
    %12 = vector.broadcast %cst_11 : f32 to vector<16x1xf32>
    %13 = arith.mulf %9, %12 : vector<16x1xf32>
    %14 = arith.mulf %11, %11 : vector<16x1xf32>
    %15 = arith.subf %13, %14 : vector<16x1xf32>
    %cst_12 = arith.constant 0.000000e+00 : f32
    %16 = vector.broadcast %cst_12 : f32 to vector<16x1xf32>
    %17 = arith.maximumf %15, %16 : vector<16x1xf32>
    %cst_13 = arith.constant 9.99999974E-6 : f32
    %18 = vector.broadcast %cst_13 : f32 to vector<16x1xf32>
    %19 = arith.addf %17, %18 : vector<16x1xf32>
    %20 = math.rsqrt %19 : vector<16x1xf32>
    %21 = vector.broadcast %11 : vector<16x1xf32> to vector<16x32xf32>
    %22 = arith.subf %4, %21 : vector<16x32xf32>
    %23 = vector.broadcast %20 : vector<16x1xf32> to vector<16x32xf32>
    %24 = arith.mulf %22, %23 : vector<16x32xf32>
    %25 = vector.broadcast %0 : vector<1x32xf32> to vector<16x32xf32>
    %26 = arith.mulf %24, %25 : vector<16x32xf32>
    %27 = vector.broadcast %1 : vector<1x32xf32> to vector<16x32xf32>
    %28 = arith.addf %26, %27 : vector<16x32xf32>
    %cst_14 = arith.constant dense<0.000000e+00> : vector<16x32xf32>
    %29 = tpu.matmul %28, %2, %cst_14 {dimension_numbers = #tpu.dot_dimension_numbers<[1], [0], [0], [1], [0, 0, 1, 1], [], []>} : vector<16x32xf32>, vector<32x32xf32>, vector<16x32xf32> -> vector<16x32xf32>
    %30 = vector.broadcast %3 : vector<1x32xf32> to vector<16x32xf32>
    %31 = arith.addf %29, %30 : vector<16x32xf32>
    %c0_15 = arith.constant 0 : index
    %c0_16 = arith.constant 0 : index
    %32 = vector.load %arg7[%c0_15, %c0_16] : memref<16x32xf32, #tpu.memory_space<vmem>>, vector<16x32xf32>
    tpu.vector_store %arg7[%c0_15, %c0_16], %31 {strides = array<i32>} : memref<16x32xf32, #tpu.memory_space<vmem>>, vector<16x32xf32>,
    return
  }
  func.func @transform_0(%arg0: i32, %arg1: i32) -> (i32, i32) {
    %c0_i32 = arith.constant 0 : i32
    %c0_i32_0 = arith.constant 0 : i32
    return %arg1, %c0_i32 : i32, i32
  }
  func.func @transform_1(%arg0: i32, %arg1: i32) -> (i32, i32) {
    %c0_i32 = arith.constant 0 : i32
    %c0_i32_0 = arith.constant 0 : i32
    %c0_i32_1 = arith.constant 0 : i32
    return %c0_i32, %c0_i32_0 : i32, i32
  }
  func.func @transform_2(%arg0: i32, %arg1: i32) -> (i32, i32) {
    %c0_i32 = arith.constant 0 : i32
    %c0_i32_0 = arith.constant 0 : i32
    %c0_i32_1 = arith.constant 0 : i32
    return %c0_i32, %c0_i32_0 : i32, i32
  }
  func.func @transform_3(%arg0: i32, %arg1: i32) -> (i32, i32) {
    %c0_i32 = arith.constant 0 : i32
    %c0_i32_0 = arith.constant 0 : i32
    return %c0_i32, %arg0 : i32, i32
  }
  func.func @transform_4(%arg0: i32, %arg1: i32) -> (i32, i32) {
    %c0_i32 = arith.constant 0 : i32
    %c0_i32_0 = arith.constant 0 : i32
    return %c0_i32, %arg0 : i32, i32
  }
  func.func @transform_5(%arg0: i32, %arg1: i32) -> (i32, i32) {
    %c0_i32 = arith.constant 0 : i32
    return %arg1, %arg0 : i32, i32
  }
}

</mosaic_0001>

<llo_original>
// kernel: tpu_custom_call.1
$region0: #{tpu_custom_call.1}
  #allocation0 [shape = 'u32[]', space=smem, size = 0x4, offset = 0x4, fixed_abs, tag = 'smem constant byte address 0x4 - core index']
  #allocation1 [shape = 'u32[72,128]{1,0:T(1,128)}', space=vmem, size = 0x9000, scoped, tag = 'internal scratch']
  %s0 = inlined_call_operand.hbm [shape: f32[16,32], index: 0, kind: input, shape index: {}]
  %s1 = inlined_call_operand.hbm [shape: f32[1,32], index: 1, kind: input, shape index: {}]
  %s2 = inlined_call_operand.vmem [shape: f32[1,32], index: 2, kind: input, shape index: {}]
  %s3 = inlined_call_operand.hbm [shape: f32[32,32], index: 3, kind: input, shape index: {}]
  %s4 = inlined_call_operand.vmem [shape: f32[1,32], index: 4, kind: input, shape index: {}]
  %s5 = inlined_call_operand.hbm [shape: f32[16,32], index: 5, kind: output, shape index: {}]
  %s6 = sld [smem:[#allocation0]]
  $region42: #{tpu_custom_call.1} parent=0
    _
  %s8 = ssub.s32 1, %s6
  %s9 = scalar_select 0, %s8, %s6
  $region1: #{tpu_custom_call.1} parent=0
    #allocation2 [shape = 'u8[8192]{0}', space=vmem, size = 0x2000, scoped, tag = 'input window, operand 0, single buffered']
    #allocation3 [shape = 's32[1]{0}', space=sflag, size = 0x4, scoped, tag = 'scoped memory for tpu_custom_call.1']
    #allocation4 [shape = 's32[1]{0}', space=sflag, size = 0x4, scoped, tag = 'scoped memory for tpu_custom_call.1']
    #allocation5 [shape = 'u8[512]{0}', space=vmem, size = 0x400, scoped, tag = 'input window, operand 1, single buffered']
    #allocation6 [shape = 's32[1]{0}', space=sflag, size = 0x4, scoped, tag = 'scoped memory for tpu_custom_call.1']
    #allocation7 [shape = 'u8[16384]{0}', space=vmem, size = 0x4000, scoped, tag = 'input window, operand 3, single buffered']
    #allocation8 [shape = 'u8[8192]{0}', space=vmem, size = 0x2000, scoped, tag = 'output window, operand 0, single buffered']
    %10 = vsyncpa [#allocation3], 0
    %11 = vsyncpa [#allocation6], 0
    %12 = vsyncpa [#allocation4], 0
    // Predicated region
    $region2: #{tpu_custom_call.1} parent=1 // pred_check
      _
    $region3: #{tpu_custom_call.1} parent=1 // pred_check_branch
      %14 = sbr.rel (0) target = $region5
    $region4: #{tpu_custom_call.1} parent=1 // pred_region
      %16 = vsyncadd [#allocation3], 0
      %s17 = sshll.u32 %s0, 4
      %s18 = int_to_ptr.hbm [resolvable:$true] %s17
      %s19 = sshll.u32 [#allocation2], 4
      %s20 = int_to_ptr.vmem [resolvable:$true] %s19
      %25 = dma.hbm_to_vmem [thread:$0]  %s18, 256, %s20, [#allocation3], 128, 128, 8
    $region5: #{tpu_custom_call.1} parent=1 // pred_fallthru
      _
    // Predicated region
    $region6: #{tpu_custom_call.1} parent=1 // pred_check
      _
    $region7: #{tpu_custom_call.1} parent=1 // pred_check_branch
      %27 = sbr.rel (0) target = $region9
    $region8: #{tpu_custom_call.1} parent=1 // pred_region
      %29 = vsyncadd [#allocation6], 0
      %s31 = sshll.u32 %s1, 4
      %s32 = int_to_ptr.hbm [resolvable:$true] %s31
      %s33 = sshll.u32 [#allocation5], 4
      %s34 = int_to_ptr.vmem [resolvable:$true] %s33
      %36 = dma.hbm_to_vmem [thread:$0]  %s32, 16, %s34, [#allocation6]
    $region9: #{tpu_custom_call.1} parent=1 // pred_fallthru
      _
    // Predicated region
    $region10: #{tpu_custom_call.1} parent=1 // pred_check
      _
    $region11: #{tpu_custom_call.1} parent=1 // pred_check_branch
      %38 = sbr.rel (0) target = $region13
    $region12: #{tpu_custom_call.1} parent=1 // pred_region
      _
    $region13: #{tpu_custom_call.1} parent=1 // pred_fallthru
      _
    // Predicated region
    $region14: #{tpu_custom_call.1} parent=1 // pred_check
      _
    $region15: #{tpu_custom_call.1} parent=1 // pred_check_branch
      %40 = sbr.rel (0) target = $region17
    $region16: #{tpu_custom_call.1} parent=1 // pred_region
      %42 = vsyncadd [#allocation6], 0
      %s43 = sshll.u32 %s3, 4
      %s44 = int_to_ptr.hbm [resolvable:$true] %s43
      %s45 = sshll.u32 [#allocation7], 4
      %s46 = int_to_ptr.vmem [resolvable:$true] %s45
      %51 = dma.hbm_to_vmem [thread:$0]  %s44, 512, %s46, [#allocation6], 128, 128, 8
    $region17: #{tpu_custom_call.1} parent=1 // pred_fallthru
      _
    // Predicated region
    $region18: #{tpu_custom_call.1} parent=1 // pred_check
      _
    $region19: #{tpu_custom_call.1} parent=1 // pred_check_branch
      %53 = sbr.rel (0) target = $region21
    $region20: #{tpu_custom_call.1} parent=1 // pred_region
      _
    $region21: #{tpu_custom_call.1} parent=1 // pred_fallthru
      _
    // Predicated region
    $region22: #{tpu_custom_call.1} parent=1 // pred_check
      _
    $region23: #{tpu_custom_call.1} parent=1 // pred_check_branch
      %55 = sbr.rel (0) target = $region25
    $region24: #{tpu_custom_call.1} parent=1 // pred_region
      %57 = dma.done [#allocation3], 256
    $region25: #{tpu_custom_call.1} parent=1 // pred_fallthru
      _
    // Predicated region
    $region26: #{tpu_custom_call.1} parent=1 // pred_check
      _
    $region27: #{tpu_custom_call.1} parent=1 // pred_check_branch
      %59 = sbr.rel (0) target = $region29
    $region28: #{tpu_custom_call.1} parent=1 // pred_region
      %61 = dma.done [#allocation6], 16
    $region29: #{tpu_custom_call.1} parent=1 // pred_fallthru
      _
    // Predicated region
    $region30: #{tpu_custom_call.1} parent=1 // pred_check
      _
    $region31: #{tpu_custom_call.1} parent=1 // pred_check_branch
      %63 = sbr.rel (0) target = $region33
    $region32: #{tpu_custom_call.1} parent=1 // pred_region
      %65 = dma.done [#allocation6], 512
    $region33: #{tpu_custom_call.1} parent=1 // pred_fallthru
      _
    %v66 = vld [vmem:[#allocation5] sm:$0x1]
    %v67 = vld [vmem:[%s2] sm:$0x1]
    %v68 = vld [vmem:[#allocation7] sm:$0xff]
    %v69 = vld [vmem:[#allocation7 + $0x8] sm:$0xff]
    %v70 = vld [vmem:[#allocation7 + $0x10] sm:$0xff]
    %v71 = vld [vmem:[#allocation7 + $0x18] sm:$0xff]
    %v72 = vld [vmem:[%s4] sm:$0x1]
    %v73 = vld [vmem:[#allocation2] sm:$0xff]
    %v74 = vld [vmem:[#allocation2 + $0x8] sm:$0xff]
    %vm75 = vcmask 261120
    %v76 = vsel %vm75, %v73, 0.0
    %77 = vadd.xlane.f32.xlu0 %v76
    %v78 = vpop.xlane.xlu0 %77
    %v79 = vsel %vm75, %v74, 0.0
    %80 = vadd.xlane.f32.xlu0 %v79
    %v81 = vpop.xlane.xlu0 %80
    %v82 = vmul.f32 %v73, %v73
    %v83 = vmul.f32 %v74, %v74
    %v84 = vsel %vm75, %v82, 0.0
    %85 = vadd.xlane.f32.xlu0 %v84
    %v86 = vpop.xlane.xlu0 %85
    %v87 = vsel %vm75, %v83, 0.0
    %88 = vadd.xlane.f32.xlu0 %v87
    %v89 = vpop.xlane.xlu0 %88
    %v90 = vmul.f32 %v78, 0.03125
    %v91 = vmul.f32 %v81, 0.03125
    %v92 = vmul.f32 %v86, 0.03125
    %v93 = vmul.f32 %v89, 0.03125
    %v94 = vmul.f32 %v90, %v90
    %v95 = vmul.f32 %v91, %v91
    %v96 = vsub.f32 %v92, %v94
    %v97 = vsub.f32 %v93, %v95
    %v98 = vmax.f32 %v96, 0.0
    %v99 = vmax.f32 %v97, 0.0
    %v100 = vadd.f32 %v98, 1e-05
    %v101 = vadd.f32 %v99, 1e-05
    %v102 = vrsqrt.pop %v100
    %v103 = vmul.f32 %v102, %v100
    %v104 = vmul.f32 %v103, %v102
    %v105 = vmul.f32 0.5, %v104
    %v106 = vsub.f32 1.5, %v105
    %v107 = vmul.f32 %v102, %v106
    %vm108 = vweird.f32 %v100
    %vm109 = vweird.f32 %v102
    %vm110 = vmor %vm108, %vm109
    %v111 = vsel %vm110, %v102, %v107
    %v112 = vrsqrt.pop %v101
    %v113 = vmul.f32 %v112, %v101
    %v114 = vmul.f32 %v113, %v112
    %v115 = vmul.f32 0.5, %v114
    %v116 = vsub.f32 1.5, %v115
    %v117 = vmul.f32 %v112, %v116
    %vm118 = vweird.f32 %v101
    %vm119 = vweird.f32 %v112
    %vm120 = vmor %vm118, %vm119
    %v121 = vsel %vm120, %v112, %v117
    %v122 = vsub.f32 %v73, %v90
    %v123 = vsub.f32 %v74, %v91
    %v124 = vmul.f32 %v122, %v111
    %v125 = vmul.f32 %v123, %v121
    %v127 = vperm.slane %v66, 0
    %v129 = vmul.f32 %v124, %v127
    %v130 = vmul.f32 %v125, %v127
    %v132 = vperm.slane %v67, 0
    %v134 = vadd.f32 %v129, %v132
    %v135 = vadd.f32 %v130, %v132
    %v137 = vperm.slane %v72, 0
    %v140 = vsel %vm75, %v134, 0
    %v143 = vsel %vm75, %v135, 0
    %145 = vmatpush.msra.mxu0 0.0
    %146 = vmatpush.msra.mxu0 0.0
    %147 = vmatpush.msra.mxu0 0.0
    %148 = vmatpush.msra.mxu0 0.0
    %149 = vmatpush.msra.mxu0 0.0
    %150 = vmatpush.msra.mxu0 0.0
    %151 = vmatpush.msra.mxu0 0.0
    %152 = vmatpush.msra.mxu0 0.0
    %153 = vmatpush.msra.mxu0 0.0
    %154 = vmatpush.msra.mxu0 0.0
    %155 = vmatpush.msra.mxu0 0.0
    %156 = vmatpush.msra.mxu0 0.0
    %157 = vmatpush.msra.mxu0 %v71
    %158 = vmatpush.msra.mxu0 %v70
    %159 = vmatpush.msra.mxu0 %v69
    %160 = vmatpush.msra.mxu0 %v68
    %161 = vmatmul.f32.gmra.mxu0 %v140
    %v162 = vpop.f32.mrf.mxu0
    %v163 = vadd.f32 %v137, %v162
    %164 = vmatmul.f32.gmra.mxu0 %v143
    %v165 = vpop.f32.mrf.mxu0
    %v166 = vadd.f32 %v137, %v165
    %167 = vdwg.mxu0
    %168 = vst.msk [vmem:[#allocation8] sm:$0xff] %vm75, %v163
    %169 = vst.msk [vmem:[#allocation8 + $0x8] sm:$0xff] %vm75, %v166
    // Predicated region
    $region34: #{tpu_custom_call.1} parent=1 // pred_check
      _
    $region35: #{tpu_custom_call.1} parent=1 // pred_check_branch
      %171 = sbr.rel (0) target = $region37
    $region36: #{tpu_custom_call.1} parent=1 // pred_region
      %173 = vsyncadd [#allocation4], 0
      %s174 = sshll.u32 [#allocation8], 4
      %s175 = int_to_ptr.vmem [resolvable:$true] %s174
      %s176 = sshll.u32 %s5, 4
      %s177 = int_to_ptr.hbm [resolvable:$true] %s176
      %182 = dma.vmem_to_hbm [thread:$0]  %s175, 256, %s177, [#allocation4], 128, 128, 8
    $region37: #{tpu_custom_call.1} parent=1 // pred_fallthru
      _
    // Predicated region
    $region38: #{tpu_custom_call.1} parent=1 // pred_check
      _
    $region39: #{tpu_custom_call.1} parent=1 // pred_check_branch
      %184 = sbr.rel (0) target = $region41
    $region40: #{tpu_custom_call.1} parent=1 // pred_region
      %186 = dma.done [#allocation4], 256
    $region41: #{tpu_custom_call.1} parent=1 // pred_fallthru
      _
    %187 = vsyncpa [#allocation3], 1
    %188 = vsyncpa [#allocation6], 1
    %189 = vsyncpa [#allocation4], 1

// kernel: tpu_custom_call.1
$region0: #{tpu_custom_call.1}
  #allocation0 [shape = 'u32[]', space=smem, size = 0x4, offset = 0x4, fixed_abs, tag = 'smem constant byte address 0x4 - core index']
  #allocation1 [shape = 'u32[72,128]{1,0:T(1,128)}', space=vmem, size = 0x9000, scoped, tag = 'internal scratch']
  %s0 = inlined_call_operand.hbm [shape: f32[16,32], index: 0, kind: input, shape index: {}]
  %s1 = inlined_call_operand.hbm [shape: f32[1,32], index: 1, kind: input, shape index: {}]
  %s2 = inlined_call_operand.vmem [shape: f32[1,32], index: 2, kind: input, shape index: {}]
  %s3 = inlined_call_operand.hbm [shape: f32[32,32], index: 3, kind: input, shape index: {}]
  %s4 = inlined_call_operand.vmem [shape: f32[1,32], index: 4, kind: input, shape index: {}]
  %s5 = inlined_call_operand.hbm [shape: f32[16,32], index: 5, kind: output, shape index: {}]
  %s6 = sld [smem:[#allocation0]]
  $region42: #{tpu_custom_call.1} parent=0
    _
  %s8 = ssub.s32 1, %s6
  %s9 = scalar_select 0, %s8, %s6
  $region1: #{tpu_custom_call.1} parent=0
    #allocation2 [shape = 'u8[8192]{0}', space=vmem, size = 0x2000, scoped, tag = 'input window, operand 0, single buffered']
    #allocation3 [shape = 's32[1]{0}', space=sflag, size = 0x4, scoped, tag = 'scoped memory for tpu_custom_call.1']
    #allocation4 [shape = 's32[1]{0}', space=sflag, size = 0x4, scoped, tag = 'scoped memory for tpu_custom_call.1']
    #allocation5 [shape = 'u8[512]{0}', space=vmem, size = 0x400, scoped, tag = 'input window, operand 1, single buffered']
    #allocation6 [shape = 's32[1]{0}', space=sflag, size = 0x4, scoped, tag = 'scoped memory for tpu_custom_call.1']
    #allocation7 [shape = 'u8[16384]{0}', space=vmem, size = 0x4000, scoped, tag = 'input window, operand 3, single buffered']
    #allocation8 [shape = 'u8[8192]{0}', space=vmem, size = 0x2000, scoped, tag = 'output window, operand 0, single buffered']
    %10 = vsyncpa [#allocation3], 0
    %11 = vsyncpa [#allocation6], 0
    %12 = vsyncpa [#allocation4], 0
    // Predicated region
    $region2: #{tpu_custom_call.1} parent=1 // pred_check
      _
    $region3: #{tpu_custom_call.1} parent=1 // pred_check_branch
      %14 = sbr.rel (0) target = $region5
    $region4: #{tpu_custom_call.1} parent=1 // pred_region
      %16 = vsyncadd [#allocation3], 0
      %s17 = sshll.u32 %s0, 4
      %s18 = int_to_ptr.hbm [resolvable:$true] %s17
      %s19 = sshll.u32 [#allocation2], 4
      %s20 = int_to_ptr.vmem [resolvable:$true] %s19
      %25 = dma.hbm_to_vmem [thread:$0]  %s18, 256, %s20, [#allocation3], 128, 128, 8
    $region5: #{tpu_custom_call.1} parent=1 // pred_fallthru
      _
    // Predicated region
    $region6: #{tpu_custom_call.1} parent=1 // pred_check
      _
    $region7: #{tpu_custom_call.1} parent=1 // pred_check_branch
      %27 = sbr.rel (0) target = $region9
    $region8: #{tpu_custom_call.1} parent=1 // pred_region
      %29 = vsyncadd [#allocation6], 0
      %s31 = sshll.u32 %s1, 4
      %s32 = int_to_ptr.hbm [resolvable:$true] %s31
      %s33 = sshll.u32 [#allocation5], 4
      %s34 = int_to_ptr.vmem [resolvable:$true] %s33
      %36 = dma.hbm_to_vmem [thread:$0]  %s32, 16, %s34, [#allocation6]
    $region9: #{tpu_custom_call.1} parent=1 // pred_fallthru
      _
    // Predicated region
    $region10: #{tpu_custom_call.1} parent=1 // pred_check
      _
    $region11: #{tpu_custom_call.1} parent=1 // pred_check_branch
      %38 = sbr.rel (0) target = $region13
    $region12: #{tpu_custom_call.1} parent=1 // pred_region
      _
    $region13: #{tpu_custom_call.1} parent=1 // pred_fallthru
      _
    // Predicated region
    $region14: #{tpu_custom_call.1} parent=1 // pred_check
      _
    $region15: #{tpu_custom_call.1} parent=1 // pred_check_branch
      %40 = sbr.rel (0) target = $region17
    $region16: #{tpu_custom_call.1} parent=1 // pred_region
      %42 = vsyncadd [#allocation6], 0
      %s43 = sshll.u32 %s3, 4
      %s44 = int_to_ptr.hbm [resolvable:$true] %s43
      %s45 = sshll.u32 [#allocation7], 4
      %s46 = int_to_ptr.vmem [resolvable:$true] %s45
      %51 = dma.hbm_to_vmem [thread:$0]  %s44, 512, %s46, [#allocation6], 128, 128, 8
    $region17: #{tpu_custom_call.1} parent=1 // pred_fallthru
      _
    // Predicated region
    $region18: #{tpu_custom_call.1} parent=1 // pred_check
      _
    $region19: #{tpu_custom_call.1} parent=1 // pred_check_branch
      %53 = sbr.rel (0) target = $region21
    $region20: #{tpu_custom_call.1} parent=1 // pred_region
      _
    $region21: #{tpu_custom_call.1} parent=1 // pred_fallthru
      _
    // Predicated region
    $region22: #{tpu_custom_call.1} parent=1 // pred_check
      _
    $region23: #{tpu_custom_call.1} parent=1 // pred_check_branch
      %55 = sbr.rel (0) target = $region25
    $region24: #{tpu_custom_call.1} parent=1 // pred_region
      %57 = dma.done [#allocation3], 256
    $region25: #{tpu_custom_call.1} parent=1 // pred_fallthru
      _
    // Predicated region
    $region26: #{tpu_custom_call.1} parent=1 // pred_check
      _
    $region27: #{tpu_custom_call.1} parent=1 // pred_check_branch
      %59 = sbr.rel (0) target = $region29
    $region28: #{tpu_custom_call.1} parent=1 // pred_region
      %61 = dma.done [#allocation6], 16
    $region29: #{tpu_custom_call.1} parent=1 // pred_fallthru
      _
    // Predicated region
    $region30: #{tpu_custom_call.1} parent=1 // pred_check
      _
    $region31: #{tpu_custom_call.1} parent=1 // pred_check_branch
      %63 = sbr.rel (0) target = $region33
    $region32: #{tpu_custom_call.1} parent=1 // pred_region
      %65 = dma.done [#allocation6], 512
    $region33: #{tpu_custom_call.1} parent=1 // pred_fallthru
      _
    %v66 = vld [vmem:[#allocation5] sm:$0x1]
    %v67 = vld [vmem:[%s2] sm:$0x1]
    %v68 = vld [vmem:[#allocation7] sm:$0xff]
    %v69 = vld [vmem:[#allocation7 + $0x8] sm:$0xff]
    %v70 = vld [vmem:[#allocation7 + $0x10] sm:$0xff]
    %v71 = vld [vmem:[#allocation7 + $0x18] sm:$0xff]
    %v72 = vld [vmem:[%s4] sm:$0x1]
    %v73 = vld [vmem:[#allocation2] sm:$0xff]
    %v74 = vld [vmem:[#allocation2 + $0x8] sm:$0xff]
    %vm75 = vcmask 261120
    %v76 = vsel %vm75, %v73, 0.0
    %77 = vadd.xlane.f32.xlu0 %v76
    %v78 = vpop.xlane.xlu0 %77
    %v79 = vsel %vm75, %v74, 0.0
    %80 = vadd.xlane.f32.xlu0 %v79
    %v81 = vpop.xlane.xlu0 %80
    %v82 = vmul.f32 %v73, %v73
    %v83 = vmul.f32 %v74, %v74
    %v84 = vsel %vm75, %v82, 0.0
    %85 = vadd.xlane.f32.xlu0 %v84
    %v86 = vpop.xlane.xlu0 %85
    %v87 = vsel %vm75, %v83, 0.0
    %88 = vadd.xlane.f32.xlu0 %v87
    %v89 = vpop.xlane.xlu0 %88
    %v90 = vmul.f32 %v78, 0.03125
    %v91 = vmul.f32 %v81, 0.03125
    %v92 = vmul.f32 %v86, 0.03125
    %v93 = vmul.f32 %v89, 0.03125
    %v94 = vmul.f32 %v90, %v90
    %v95 = vmul.f32 %v91, %v91
    %v96 = vsub.f32 %v92, %v94
    %v97 = vsub.f32 %v93, %v95
    %v98 = vmax.f32 %v96, 0.0
    %v99 = vmax.f32 %v97, 0.0
    %v100 = vadd.f32 %v98, 1e-05
    %v101 = vadd.f32 %v99, 1e-05
    %v102 = vrsqrt.pop %v100
    %v103 = vmul.f32 %v102, %v100
    %v104 = vmul.f32 %v103, %v102
    %v105 = vmul.f32 0.5, %v104
    %v106 = vsub.f32 1.5, %v105
    %v107 = vmul.f32 %v102, %v106
    %vm108 = vweird.f32 %v100
    %vm109 = vweird.f32 %v102
    %vm110 = vmor %vm108, %vm109
    %v111 = vsel %vm110, %v102, %v107
    %v112 = vrsqrt.pop %v101
    %v113 = vmul.f32 %v112, %v101
    %v114 = vmul.f32 %v113, %v112
    %v115 = vmul.f32 0.5, %v114
    %v116 = vsub.f32 1.5, %v115
    %v117 = vmul.f32 %v112, %v116
    %vm118 = vweird.f32 %v101
    %vm119 = vweird.f32 %v112
    %vm120 = vmor %vm118, %vm119
    %v121 = vsel %vm120, %v112, %v117
    %v122 = vsub.f32 %v73, %v90
    %v123 = vsub.f32 %v74, %v91
    %v124 = vmul.f32 %v122, %v111
    %v125 = vmul.f32 %v123, %v121
    %v127 = vperm.slane %v66, 0
    %v129 = vmul.f32 %v124, %v127
    %v130 = vmul.f32 %v125, %v127
    %v132 = vperm.slane %v67, 0
    %v134 = vadd.f32 %v129, %v132
    %v135 = vadd.f32 %v130, %v132
    %v137 = vperm.slane %v72, 0
    %v140 = vsel %vm75, %v134, 0
    %v143 = vsel %vm75, %v135, 0
    %145 = vmatpush.msra.mxu0 0.0
    %146 = vmatpush.msra.mxu0 0.0
    %147 = vmatpush.msra.mxu0 0.0
    %148 = vmatpush.msra.mxu0 0.0
    %149 = vmatpush.msra.mxu0 0.0
    %150 = vmatpush.msra.mxu0 0.0
    %151 = vmatpush.msra.mxu0 0.0
    %152 = vmatpush.msra.mxu0 0.0
    %153 = vmatpush.msra.mxu0 0.0
    %154 = vmatpush.msra.mxu0 0.0
    %155 = vmatpush.msra.mxu0 0.0
    %156 = vmatpush.msra.mxu0 0.0
    %157 = vmatpush.msra.mxu0 %v71
    %158 = vmatpush.msra.mxu0 %v70
    %159 = vmatpush.msra.mxu0 %v69
    %160 = vmatpush.msra.mxu0 %v68
    %161 = vmatmul.f32.gmra.mxu0 %v140
    %v162 = vpop.f32.mrf.mxu0
    %v163 = vadd.f32 %v137, %v162
    %164 = vmatmul.f32.gmra.mxu0 %v143
    %v165 = vpop.f32.mrf.mxu0
    %v166 = vadd.f32 %v137, %v165
    %167 = vdwg.mxu0
    %168 = vst.msk [vmem:[#allocation8] sm:$0xff] %vm75, %v163
    %169 = vst.msk [vmem:[#allocation8 + $0x8] sm:$0xff] %vm75, %v166
    // Predicated region
    $region34: #{tpu_custom_call.1} parent=1 // pred_check
      _
    $region35: #{tpu_custom_call.1} parent=1 // pred_check_branch
      %171 = sbr.rel (0) target = $region37
    $region36: #{tpu_custom_call.1} parent=1 // pred_region
      %173 = vsyncadd [#allocation4], 0
      %s174 = sshll.u32 [#allocation8], 4
      %s175 = int_to_ptr.vmem [resolvable:$true] %s174
      %s176 = sshll.u32 %s5, 4
      %s177 = int_to_ptr.hbm [resolvable:$true] %s176
      %182 = dma.vmem_to_hbm [thread:$0]  %s175, 256, %s177, [#allocation4], 128, 128, 8
    $region37: #{tpu_custom_call.1} parent=1 // pred_fallthru
      _
    // Predicated region
    $region38: #{tpu_custom_call.1} parent=1 // pred_check
      _
    $region39: #{tpu_custom_call.1} parent=1 // pred_check_branch
      %184 = sbr.rel (0) target = $region41
    $region40: #{tpu_custom_call.1} parent=1 // pred_region
      %186 = dma.done [#allocation4], 256
    $region41: #{tpu_custom_call.1} parent=1 // pred_fallthru
      _
    %187 = vsyncpa [#allocation3], 1
    %188 = vsyncpa [#allocation6], 1
    %189 = vsyncpa [#allocation4], 1

</llo_original>
